<compile_context>
chip_gen: v7x
topology: tpu7x:2x2x1
jax: 0.10.0
libtpu: 0.0.40
codegen_flags: <defaults>
</compile_context>

<pallas_src>
import math
import numpy as np
import jax
import jax.numpy as jnp
from jax.experimental import pallas as pl
from jax.experimental.pallas import tpu as pltpu


def _round_up(x, m):
    return ((x + m - 1) // m) * m


def _svd_linear_kernel(x_ref, vs_ref, ut_ref, b_ref, o_ref, h_ref):
    """Grid = (batch_tiles, c_o_tiles); C_o axis is innermost.

    h = x @ V_scaled is computed once per batch tile (first C_o step) and kept
    in VMEM scratch; every C_o tile then does a single MXU pass + f32 bias add.
    """
    n = pl.program_id(1)

    @pl.when(n == 0)
    def _():
        h_ref[...] = jnp.dot(
            x_ref[...], vs_ref[...], preferred_element_type=jnp.float32
        )

    h = h_ref[...].astype(ut_ref.dtype)
    y = jnp.dot(h, ut_ref[...], preferred_element_type=jnp.float32)
    # bias add + final cast in f32 (VPU-friendly epilogue on v5e).
    o_ref[...] = (y + b_ref[...]).astype(o_ref.dtype)


def svd_linear_forward(x, V_cut, S_cut, U_cut, bias, *, compute_dtype=None):
    """x: [B, C_i]; V_cut: [C_i, k]; S_cut: [k, k] (diag); U_cut: [C_o, k]; bias: [C_o]."""
    B, C_i = x.shape
    C_o, k = U_cut.shape
    out_dtype = x.dtype
    if compute_dtype is None:
        compute_dtype = x.dtype  # pass jnp.bfloat16 here on v5e/v6e for mem-bound layers

    # --- glue: fold the diagonal S into V (removes one matmul entirely) ---
    s_diag = jnp.diagonal(S_cut)                  # [k]
    V_scaled = V_cut * s_diag[None, :]            # [C_i, k]
    U_T = U_cut.T                                 # [k, C_o]

    # --- padding to lane-dense shapes ---
    k_pad = max(_round_up(k, 128), 128)
    C_o_pad = max(_round_up(C_o, 128), 128)

    # --- tile sizes (modest caps keep the double-buffered footprint well
    #     inside v7x's 64 MiB VMEM while still amortizing per-step overhead) ---
    TB = min(_round_up(B, 8), 256)                # batch tile (multiple of 8 sublanes)
    B_pad = _round_up(B, TB)
    TN = min(C_o_pad, 512)                        # output-channel tile (multiple of 128)
    grid = (B_pad // TB, C_o_pad // TN)

    cbytes = jnp.dtype(compute_dtype).itemsize
    obytes = jnp.dtype(out_dtype).itemsize
    vmem_est = (
        2 * TB * C_i * cbytes        # x tiles (double-buffered)
        + 2 * C_i * k_pad * cbytes   # V_scaled (resident; count x2 for safety)
        + 2 * k_pad * TN * cbytes    # U^T tiles
        + 2 * TN * 4                 # bias tiles
        + 2 * TB * TN * obytes       # output tiles
        + TB * k_pad * 4             # h scratch
    )
    vmem_limit = int(min(128 * 2**20, max(32 * 2**20, 2 * vmem_est)))

    # --- zero-padded operands (zeros in padded k / C_i / C_o do not change y) ---
    x_p = jnp.zeros((B_pad, C_i), compute_dtype).at[:B, :].set(x.astype(compute_dtype))
    Vs_p = (
        jnp.zeros((C_i, k_pad), compute_dtype)
        .at[:, :k]
        .set(V_scaled.astype(compute_dtype))
    )
    UT_p = (
        jnp.zeros((k_pad, C_o_pad), compute_dtype)
        .at[:k, :C_o]
        .set(U_T.astype(compute_dtype))
    )
    b_p = (
        jnp.zeros((1, C_o_pad), jnp.float32)
        .at[:, :C_o]
        .set(bias.astype(jnp.float32).reshape(1, C_o))
    )

    out_padded = pl.pallas_call(
        _svd_linear_kernel,
        out_shape=jax.ShapeDtypeStruct((B_pad, C_o_pad), out_dtype),
        grid_spec=pltpu.PrefetchScalarGridSpec(
            num_scalar_prefetch=0,
            grid=grid,
            in_specs=[
                pl.BlockSpec((TB, C_i), lambda b, n: (b, 0)),       # x: constant over n
                pl.BlockSpec((C_i, k_pad), lambda b, n: (0, 0)),    # V_scaled: resident
                pl.BlockSpec((k_pad, TN), lambda b, n: (0, n)),     # U^T: per C_o tile
                pl.BlockSpec((1, TN), lambda b, n: (0, n)),         # bias: per C_o tile
            ],
            out_specs=pl.BlockSpec((TB, TN), lambda b, n: (b, n)),
            scratch_shapes=[pltpu.VMEM((TB, k_pad), jnp.float32)],  # cached h = x @ V_s
        ),
        compiler_params=pltpu.CompilerParams(
            dimension_semantics=("parallel", "arbitrary"),
            vmem_limit_bytes=vmem_limit,
        ),
    )(x_p, Vs_p, UT_p, b_p)

    return out_padded[:B, :C_o]


def build_svd_linear_params(key, in_size, out_size, compression_rate=0.8):
    """Deterministic synthetic construction mirroring SVD_Linear.__init__."""
    k_w, k_b = jax.random.split(key)
    bound_w = 1.0 / math.sqrt(in_size)
    fc_weight = np.asarray(
        jax.random.uniform(k_w, (out_size, in_size), jnp.float32, -bound_w, bound_w)
    )
    num_params_fc = fc_weight.size + out_size  # weight + bias

    U, SVs, Vt = np.linalg.svd(fc_weight)
    num_SVs = len(SVs)
    target_params = num_params_fc * compression_rate
    num_selected_SVs = num_SVs
    for i in range(num_SVs):
        num_params_svd = U[:, :i].size + SVs[:i].size + Vt[:i].size + out_size
        if num_params_svd >= target_params:
            num_selected_SVs = i
            break

    U_cut = jnp.asarray(U[:, :num_selected_SVs], dtype=jnp.float32)          # [C_o, k]
    S_cut = jnp.asarray(np.diag(SVs[:num_selected_SVs]), dtype=jnp.float32)  # [k, k]
    V_cut = jnp.asarray(Vt[:num_selected_SVs].T, dtype=jnp.float32)          # [C_i, k]

    bound_b = 1.0 / math.sqrt(in_size)
    bias = jax.random.uniform(k_b, (out_size,), jnp.float32, -bound_b, bound_b)
    return V_cut, S_cut, U_cut, bias


if __name__ == "__main__":
    key = jax.random.PRNGKey(0)
    k_params, k_x = jax.random.split(key)

    B, in_size, out_size = 8, 32, 16
    V_cut, S_cut, U_cut, bias = build_svd_linear_params(
        k_params, in_size, out_size, compression_rate=0.8
    )

    x = jax.random.normal(k_x, (B, in_size), jnp.float32)

    out = svd_linear_forward(x, V_cut, S_cut, U_cut, bias)
    out = jax.block_until_ready(out)

    # pure-JAX reference of the original module semantics
    ref = ((x @ V_cut) @ S_cut.T) @ U_cut.T + bias
    np.testing.assert_allclose(np.asarray(out), np.asarray(ref), rtol=1e-5, atol=1e-5)

    print("KERNEL_OK")
</pallas_src>

<mosaic_0001>
module attributes {stable_mosaic.version = 11 : i64} {
  func.func @_svd_linear_kernel(%arg0: i32, %arg1: i32, %arg2: memref<8x32xf32, #tpu.memory_space<vmem>>, %arg3: memref<32x128xf32, #tpu.memory_space<vmem>>, %arg4: memref<128x128xf32, #tpu.memory_space<vmem>>, %arg5: memref<1x128xf32, #tpu.memory_space<vmem>>, %arg6: memref<8x128xf32, #tpu.memory_space<vmem>>, %arg7: memref<8x128xf32, #tpu.memory_space<vmem>>) attributes {dimension_semantics = [#tpu.dimension_semantics<parallel>, #tpu.dimension_semantics<arbitrary>], iteration_bounds = array<i64: 1, 1>, scalar_prefetch = 0 : i64, scratch_operands = 1 : i64, tpu.core_type = #tpu.core_type<tc>, window_params = [{transform_indices = @transform_0, window_bounds = array<i64: 8, 32>}, {pipeline_mode = #tpu.pipeline_mode<synchronous>, transform_indices = @transform_1, window_bounds = array<i64: 32, 128>}, {transform_indices = @transform_2, window_bounds = array<i64: 128, 128>}, {transform_indices = @transform_3, window_bounds = array<i64: 1, 128>}, {transform_indices = @transform_4, window_bounds = array<i64: 8, 128>}]} {
    %c0_i32 = arith.constant 0 : i32
    %0 = arith.cmpi eq, %arg1, %c0_i32 : i32
    %1 = arith.extui %0 : i1 to i32
    %c0_i32_0 = arith.constant 0 : i32
    %2 = arith.cmpi ne, %1, %c0_i32_0 : i32
    scf.if %2 {
      %c0_8 = arith.constant 0 : index
      %c0_9 = arith.constant 0 : index
      %10 = vector.load %arg2[%c0_8, %c0_9] : memref<8x32xf32, #tpu.memory_space<vmem>>, vector<8x32xf32>
      %c0_10 = arith.constant 0 : index
      %c0_11 = arith.constant 0 : index
      %11 = vector.load %arg3[%c0_10, %c0_11] : memref<32x128xf32, #tpu.memory_space<vmem>>, vector<32x128xf32>
      %cst_12 = arith.constant dense<0.000000e+00> : vector<8x128xf32>
      %12 = tpu.matmul %10, %11, %cst_12 {dimension_numbers = #tpu.dot_dimension_numbers<[1], [0], [0], [1], [0, 0, 1, 1], [], []>} : vector<8x32xf32>, vector<32x128xf32>, vector<8x128xf32> -> vector<8x128xf32>
      %c0_13 = arith.constant 0 : index
      %c0_14 = arith.constant 0 : index
      %13 = vector.load %arg7[%c0_13, %c0_14] : memref<8x128xf32, #tpu.memory_space<vmem>>, vector<8x128xf32>
      tpu.vector_store %arg7[%c0_13, %c0_14], %12 {strides = array<i32>} : memref<8x128xf32, #tpu.memory_space<vmem>>, vector<8x128xf32>,
    } else {
    }
    %c0 = arith.constant 0 : index
    %c0_1 = arith.constant 0 : index
    %3 = vector.load %arg7[%c0, %c0_1] : memref<8x128xf32, #tpu.memory_space<vmem>>, vector<8x128xf32>
    %c0_2 = arith.constant 0 : index
    %c0_3 = arith.constant 0 : index
    %4 = vector.load %arg4[%c0_2, %c0_3] : memref<128x128xf32, #tpu.memory_space<vmem>>, vector<128x128xf32>
    %cst = arith.constant dense<0.000000e+00> : vector<8x128xf32>
    %5 = tpu.matmul %3, %4, %cst {dimension_numbers = #tpu.dot_dimension_numbers<[1], [0], [0], [1], [0, 0, 1, 1], [], []>} : vector<8x128xf32>, vector<128x128xf32>, vector<8x128xf32> -> vector<8x128xf32>
    %c0_4 = arith.constant 0 : index
    %c0_5 = arith.constant 0 : index
    %6 = vector.load %arg5[%c0_4, %c0_5] : memref<1x128xf32, #tpu.memory_space<vmem>>, vector<1x128xf32>
    %7 = vector.broadcast %6 : vector<1x128xf32> to vector<8x128xf32>
    %8 = arith.addf %5, %7 : vector<8x128xf32>
    %c0_6 = arith.constant 0 : index
    %c0_7 = arith.constant 0 : index
    %9 = vector.load %arg6[%c0_6, %c0_7] : memref<8x128xf32, #tpu.memory_space<vmem>>, vector<8x128xf32>
    tpu.vector_store %arg6[%c0_6, %c0_7], %8 {strides = array<i32>} : memref<8x128xf32, #tpu.memory_space<vmem>>, vector<8x128xf32>,
    return
  }
  func.func @transform_0(%arg0: i32, %arg1: i32) -> (i32, i32) {
    %c0_i32 = arith.constant 0 : i32
    %c0_i32_0 = arith.constant 0 : i32
    return %arg0, %c0_i32 : i32, i32
  }
  func.func @transform_1(%arg0: i32, %arg1: i32) -> (i32, i32) {
    %c0_i32 = arith.constant 0 : i32
    %c0_i32_0 = arith.constant 0 : i32
    %c0_i32_1 = arith.constant 0 : i32
    return %c0_i32, %c0_i32_0 : i32, i32
  }
  func.func @transform_2(%arg0: i32, %arg1: i32) -> (i32, i32) {
    %c0_i32 = arith.constant 0 : i32
    %c0_i32_0 = arith.constant 0 : i32
    return %c0_i32, %arg1 : i32, i32
  }
  func.func @transform_3(%arg0: i32, %arg1: i32) -> (i32, i32) {
    %c0_i32 = arith.constant 0 : i32
    %c0_i32_0 = arith.constant 0 : i32
    return %c0_i32, %arg1 : i32, i32
  }
  func.func @transform_4(%arg0: i32, %arg1: i32) -> (i32, i32) {
    %c0_i32 = arith.constant 0 : i32
    return %arg0, %arg1 : i32, i32
  }
}

</mosaic_0001>

<llo_original>
// kernel: tpu_custom_call.1
$region0: #{tpu_custom_call.1}
  #allocation0 [shape = 'u32[]', space=smem, size = 0x4, offset = 0x4, fixed_abs, tag = 'smem constant byte address 0x4 - core index']
  #allocation1 [shape = 'u32[144,128]{1,0:T(1,128)}', space=vmem, size = 0x12000, scoped, tag = 'internal scratch']
  #allocation2 [shape = 'f32[8,128]{1,0:T(8,128)}', space=vmem, size = 0x1000, scoped, tag = 'scratch operand']
  %s0 = inlined_call_operand.hbm [shape: f32[8,32], index: 0, kind: input, shape index: {}]
  %s1 = inlined_call_operand.hbm [shape: f32[32,128], index: 1, kind: input, shape index: {}]
  %s2 = inlined_call_operand.hbm [shape: f32[128,128], index: 2, kind: input, shape index: {}]
  %s3 = inlined_call_operand.vmem [shape: f32[1,128], index: 3, kind: input, shape index: {}]
  %s4 = inlined_call_operand.hbm [shape: f32[8,128], index: 4, kind: output, shape index: {}]
  %s5 = sld [smem:[#allocation0]]
  $region42: #{tpu_custom_call.1} parent=0
    _
  %s7 = ssub.s32 1, %s5
  %s8 = scalar_select 0, %s7, %s5
  $region1: #{tpu_custom_call.1} parent=0
    #allocation3 [shape = 'u8[4096]{0}', space=vmem, size = 0x1000, scoped, tag = 'input window, operand 0, single buffered']
    #allocation4 [shape = 's32[1]{0}', space=sflag, size = 0x4, scoped, tag = 'scoped memory for tpu_custom_call.1']
    #allocation5 [shape = 's32[1]{0}', space=sflag, size = 0x4, scoped, tag = 'scoped memory for tpu_custom_call.1']
    #allocation6 [shape = 'u8[16384]{0}', space=vmem, size = 0x4000, scoped, tag = 'input window, operand 1, single buffered']
    #allocation7 [shape = 's32[1]{0}', space=sflag, size = 0x4, scoped, tag = 'scoped memory for tpu_custom_call.1']
    #allocation8 [shape = 'u8[65536]{0}', space=vmem, size = 0x10000, scoped, tag = 'input window, operand 2, single buffered']
    #allocation9 [shape = 'u8[4096]{0}', space=vmem, size = 0x1000, scoped, tag = 'output window, operand 0, single buffered']
    %9 = vsyncpa [#allocation4], 0
    %10 = vsyncpa [#allocation7], 0
    %11 = vsyncpa [#allocation5], 0
    // Predicated region
    $region2: #{tpu_custom_call.1} parent=1 // pred_check
      _
    $region3: #{tpu_custom_call.1} parent=1 // pred_check_branch
      %13 = sbr.rel (0) target = $region5
    $region4: #{tpu_custom_call.1} parent=1 // pred_region
      %s15 = ssub.s32 128, 128
      %16 = vsyncadd [#allocation4], %s15
      %s18 = sshll.u32 [#allocation3], 4
      %s19 = int_to_ptr.vmem [resolvable:$true] %s18
      %21 = dma.hbm_to_vmem [thread:$0]  %s0, 128, %s19, [#allocation4]
    $region5: #{tpu_custom_call.1} parent=1 // pred_fallthru
      _
    // Predicated region
    $region6: #{tpu_custom_call.1} parent=1 // pred_check
      _
    $region7: #{tpu_custom_call.1} parent=1 // pred_check_branch
      %23 = sbr.rel (0) target = $region9
    $region8: #{tpu_custom_call.1} parent=1 // pred_region
      %s25 = ssub.s32 512, 512
      %26 = vsyncadd [#allocation7], %s25
      %s27 = sshll.u32 [#allocation6], 4
      %s28 = int_to_ptr.vmem [resolvable:$true] %s27
      %33 = dma.hbm_to_vmem [thread:$0]  %s1, 512, %s28, [#allocation7], 128, 128, 8
    $region9: #{tpu_custom_call.1} parent=1 // pred_fallthru
      _
    // Predicated region
    $region10: #{tpu_custom_call.1} parent=1 // pred_check
      _
    $region11: #{tpu_custom_call.1} parent=1 // pred_check_branch
      %35 = sbr.rel (0) target = $region13
    $region12: #{tpu_custom_call.1} parent=1 // pred_region
      %s37 = ssub.s32 2048, 2048
      %38 = vsyncadd [#allocation7], %s37
      %s39 = sshll.u32 [#allocation8], 4
      %s40 = int_to_ptr.vmem [resolvable:$true] %s39
      %45 = dma.hbm_to_vmem [thread:$0]  %s2, 2048, %s40, [#allocation7], 128, 128, 8
    $region13: #{tpu_custom_call.1} parent=1 // pred_fallthru
      _
    // Predicated region
    $region14: #{tpu_custom_call.1} parent=1 // pred_check
      _
    $region15: #{tpu_custom_call.1} parent=1 // pred_check_branch
      %47 = sbr.rel (0) target = $region17
    $region16: #{tpu_custom_call.1} parent=1 // pred_region
      _
    $region17: #{tpu_custom_call.1} parent=1 // pred_fallthru
      _
    // Predicated region
    $region18: #{tpu_custom_call.1} parent=1 // pred_check
      _
    $region19: #{tpu_custom_call.1} parent=1 // pred_check_branch
      %49 = sbr.rel (0) target = $region21
    $region20: #{tpu_custom_call.1} parent=1 // pred_region
      %50 = dma.done [#allocation4], 128
    $region21: #{tpu_custom_call.1} parent=1 // pred_fallthru
      _
    // Predicated region
    $region22: #{tpu_custom_call.1} parent=1 // pred_check
      _
    $region23: #{tpu_custom_call.1} parent=1 // pred_check_branch
      %52 = sbr.rel (0) target = $region25
    $region24: #{tpu_custom_call.1} parent=1 // pred_region
      %53 = dma.done [#allocation7], 512
    $region25: #{tpu_custom_call.1} parent=1 // pred_fallthru
      _
    // Predicated region
    $region26: #{tpu_custom_call.1} parent=1 // pred_check
      _
    $region27: #{tpu_custom_call.1} parent=1 // pred_check_branch
      %55 = sbr.rel (0) target = $region29
    $region28: #{tpu_custom_call.1} parent=1 // pred_region
      %56 = dma.done [#allocation7], 2048
    $region29: #{tpu_custom_call.1} parent=1 // pred_fallthru
      _
    %p57 = scmp.eq.s32.totalorder 0, 0
    // Predicated region
    $region30: #{tpu_custom_call.1} parent=1 // pred_check
      %p58 = pneg %p57
    $region31: #{tpu_custom_call.1} parent=1 // pred_check_branch
      %60 = sbr.rel (%p58) target = $region33
    $region32: #{tpu_custom_call.1} parent=1 // pred_region
      %v61 = vld [vmem:[#allocation3] sm:$0xff]
      %v62 = vld [vmem:[#allocation6] sm:$0xff]
      %v63 = vld [vmem:[#allocation6 + $0x8] sm:$0xff]
      %v64 = vld [vmem:[#allocation6 + $0x10] sm:$0xff]
      %v65 = vld [vmem:[#allocation6 + $0x18] sm:$0xff]
      %vm66 = vcmask 261120
      %v68 = vsel %vm66, %v61, 0
      %70 = vmatprep.subr.mxu0 0.0
      %71 = vmatpush1.msra.mxu0 %v62
      %72 = vmatprep.subr.mxu0 0.0
      %73 = vmatpush1.msra.mxu0 %v63
      %74 = vmatprep.subr.mxu0 0.0
      %75 = vmatpush1.msra.mxu0 %v64
      %76 = vmatprep.subr.mxu0 0.0
      %77 = vmatpush1.msra.mxu0 %v65
      %78 = vmatprep.subr.mxu0 0.0
      %79 = vmatpush1.msra.mxu0 0.0
      %80 = vmatprep.subr.mxu0 0.0
      %81 = vmatpush1.msra.mxu0 0.0
      %82 = vmatprep.subr.mxu0 0.0
      %83 = vmatpush1.msra.mxu0 0.0
      %84 = vmatprep.subr.mxu0 0.0
      %85 = vmatpush1.msra.mxu0 0.0
      %86 = vmatprep.subr.mxu0 0.0
      %87 = vmatpush1.msra.mxu0 0.0
      %88 = vmatprep.subr.mxu0 0.0
      %89 = vmatpush1.msra.mxu0 0.0
      %90 = vmatprep.subr.mxu0 0.0
      %91 = vmatpush1.msra.mxu0 0.0
      %92 = vmatprep.subr.mxu0 0.0
      %93 = vmatpush1.msra.mxu0 0.0
      %94 = vmatprep.subr.mxu0 0.0
      %95 = vmatpush1.msra.mxu0 0.0
      %96 = vmatprep.subr.mxu0 0.0
      %97 = vmatpush1.msra.mxu0 0.0
      %98 = vmatprep.subr.mxu0 0.0
      %99 = vmatpush1.msra.mxu0 0.0
      %100 = vmatprep.subr.mxu0 0.0
      %101 = vmatpush1.msra.mxu0 0.0
      %102 = vmatprep.subr.mxu0 0.0
      %103 = vmatpush1.msra.mxu0 0.0
      %104 = vmatprep.subr.mxu0 0.0
      %105 = vmatpush1.msra.mxu0 0.0
      %106 = vmatprep.subr.mxu0 0.0
      %107 = vmatpush1.msra.mxu0 0.0
      %108 = vmatprep.subr.mxu0 0.0
      %109 = vmatpush1.msra.mxu0 0.0
      %110 = vmatprep.subr.mxu0 0.0
      %111 = vmatpush1.msra.mxu0 0.0
      %112 = vmatprep.subr.mxu0 0.0
      %113 = vmatpush1.msra.mxu0 0.0
      %114 = vmatprep.subr.mxu0 0.0
      %115 = vmatpush1.msra.mxu0 0.0
      %116 = vmatprep.subr.mxu0 0.0
      %117 = vmatpush1.msra.mxu0 0.0
      %118 = vmatprep.subr.mxu0 0.0
      %119 = vmatpush1.msra.mxu0 0.0
      %120 = vmatprep.subr.mxu0 0.0
      %121 = vmatpush1.msra.mxu0 0.0
      %122 = vmatprep.subr.mxu0 0.0
      %123 = vmatpush1.msra.mxu0 0.0
      %124 = vmatprep.subr.mxu0 0.0
      %125 = vmatpush1.msra.mxu0 0.0
      %126 = vmatprep.subr.mxu0 0.0
      %127 = vmatpush1.msra.mxu0 0.0
      %128 = vmatprep.subr.mxu0 0.0
      %129 = vmatpush1.msra.mxu0 0.0
      %130 = vmatprep.subr.mxu0 0.0
      %131 = vmatpush1.msra.mxu0 0.0
      %132 = vmatprep.subr.mxu0 0.0
      %133 = vmatpush1.msra.mxu0 0.0
      %134 = vmatprep.mubr.f32.mxu0 0.0
      %135 = vmatmul.mubr.f32.gmra.mrb[0].mxu0 %v68
      %v136 = vpop.f32.mrb[0].mxu0
      %v137 = vadd.f32 0.0, %v136
      %v138 = vpop.f32.mrb[0].mxu0
      %139 = vdwg.mxu0
      %140 = vst [vmem:[#allocation2] sm:$0xff] %v137
    $region33: #{tpu_custom_call.1} parent=1 // pred_fallthru
      _
    %v141 = vld [vmem:[#allocation2] sm:$0xff]
    %v142 = vld [vmem:[#allocation8] sm:$0xff]
    %v143 = vld [vmem:[#allocation8 + $0x8] sm:$0xff]
    %v144 = vld [vmem:[#allocation8 + $0x10] sm:$0xff]
    %v145 = vld [vmem:[#allocation8 + $0x18] sm:$0xff]
    %v146 = vld [vmem:[#allocation8 + $0x20] sm:$0xff]
    %v147 = vld [vmem:[#allocation8 + $0x28] sm:$0xff]
    %v148 = vld [vmem:[#allocation8 + $0x30] sm:$0xff]
    %v149 = vld [vmem:[#allocation8 + $0x38] sm:$0xff]
    %v150 = vld [vmem:[#allocation8 + $0x40] sm:$0xff]
    %v151 = vld [vmem:[#allocation8 + $0x48] sm:$0xff]
    %v152 = vld [vmem:[#allocation8 + $0x50] sm:$0xff]
    %v153 = vld [vmem:[#allocation8 + $0x58] sm:$0xff]
    %v154 = vld [vmem:[#allocation8 + $0x60] sm:$0xff]
    %v155 = vld [vmem:[#allocation8 + $0x68] sm:$0xff]
    %v156 = vld [vmem:[#allocation8 + $0x70] sm:$0xff]
    %v157 = vld [vmem:[#allocation8 + $0x78] sm:$0xff]
    %v158 = vld [vmem:[%s3] sm:$0x1]
    %v160 = vlaneseq
    %v161 = vshrl.u32 %v160, 7
    %v162 = vsub.s32 0, %v161
    %v163 = vrot.slane %v158, %v162
    %165 = vmatprep.subr.mxu0 0.0
    %166 = vmatpush1.msra.mxu0 %v142
    %167 = vmatprep.subr.mxu0 0.0
    %168 = vmatpush1.msra.mxu0 %v143
    %169 = vmatprep.subr.mxu0 0.0
    %170 = vmatpush1.msra.mxu0 %v144
    %171 = vmatprep.subr.mxu0 0.0
    %172 = vmatpush1.msra.mxu0 %v145
    %173 = vmatprep.subr.mxu0 0.0
    %174 = vmatpush1.msra.mxu0 %v146
    %175 = vmatprep.subr.mxu0 0.0
    %176 = vmatpush1.msra.mxu0 %v147
    %177 = vmatprep.subr.mxu0 0.0
    %178 = vmatpush1.msra.mxu0 %v148
    %179 = vmatprep.subr.mxu0 0.0
    %180 = vmatpush1.msra.mxu0 %v149
    %181 = vmatprep.subr.mxu0 0.0
    %182 = vmatpush1.msra.mxu0 %v150
    %183 = vmatprep.subr.mxu0 0.0
    %184 = vmatpush1.msra.mxu0 %v151
    %185 = vmatprep.subr.mxu0 0.0
    %186 = vmatpush1.msra.mxu0 %v152
    %187 = vmatprep.subr.mxu0 0.0
    %188 = vmatpush1.msra.mxu0 %v153
    %189 = vmatprep.subr.mxu0 0.0
    %190 = vmatpush1.msra.mxu0 %v154
    %191 = vmatprep.subr.mxu0 0.0
    %192 = vmatpush1.msra.mxu0 %v155
    %193 = vmatprep.subr.mxu0 0.0
    %194 = vmatpush1.msra.mxu0 %v156
    %195 = vmatprep.subr.mxu0 0.0
    %196 = vmatpush1.msra.mxu0 %v157
    %197 = vmatprep.subr.mxu0 0.0
    %198 = vmatpush1.msra.mxu0 0.0
    %199 = vmatprep.subr.mxu0 0.0
    %200 = vmatpush1.msra.mxu0 0.0
    %201 = vmatprep.subr.mxu0 0.0
    %202 = vmatpush1.msra.mxu0 0.0
    %203 = vmatprep.subr.mxu0 0.0
    %204 = vmatpush1.msra.mxu0 0.0
    %205 = vmatprep.subr.mxu0 0.0
    %206 = vmatpush1.msra.mxu0 0.0
    %207 = vmatprep.subr.mxu0 0.0
    %208 = vmatpush1.msra.mxu0 0.0
    %209 = vmatprep.subr.mxu0 0.0
    %210 = vmatpush1.msra.mxu0 0.0
    %211 = vmatprep.subr.mxu0 0.0
    %212 = vmatpush1.msra.mxu0 0.0
    %213 = vmatprep.subr.mxu0 0.0
    %214 = vmatpush1.msra.mxu0 0.0
    %215 = vmatprep.subr.mxu0 0.0
    %216 = vmatpush1.msra.mxu0 0.0
    %217 = vmatprep.subr.mxu0 0.0
    %218 = vmatpush1.msra.mxu0 0.0
    %219 = vmatprep.subr.mxu0 0.0
    %220 = vmatpush1.msra.mxu0 0.0
    %221 = vmatprep.subr.mxu0 0.0
    %222 = vmatpush1.msra.mxu0 0.0
    %223 = vmatprep.subr.mxu0 0.0
    %224 = vmatpush1.msra.mxu0 0.0
    %225 = vmatprep.subr.mxu0 0.0
    %226 = vmatpush1.msra.mxu0 0.0
    %227 = vmatprep.subr.mxu0 0.0
    %228 = vmatpush1.msra.mxu0 0.0
    %229 = vmatprep.mubr.f32.mxu0 0.0
    %230 = vmatmul.mubr.f32.gmra.mrb[0].mxu0 %v141
    %v231 = vpop.f32.mrb[0].mxu0
    %v232 = vadd.f32 %v163, %v231
    %v233 = vpop.f32.mrb[0].mxu0
    %234 = vdwg.mxu0
    %235 = vst [vmem:[#allocation9] sm:$0xff] %v232
    // Predicated region
    $region34: #{tpu_custom_call.1} parent=1 // pred_check
      _
    $region35: #{tpu_custom_call.1} parent=1 // pred_check_branch
      %237 = sbr.rel (0) target = $region37
    $region36: #{tpu_custom_call.1} parent=1 // pred_region
      %s239 = ssub.s32 128, 128
      %240 = vsyncadd [#allocation5], %s239
      %s242 = sshll.u32 [#allocation9], 4
      %s243 = int_to_ptr.vmem [resolvable:$true] %s242
      %245 = dma.vmem_to_hbm [thread:$0]  %s243, 128, %s4, [#allocation5]
    $region37: #{tpu_custom_call.1} parent=1 // pred_fallthru
      _
    // Predicated region
    $region38: #{tpu_custom_call.1} parent=1 // pred_check
      _
    $region39: #{tpu_custom_call.1} parent=1 // pred_check_branch
      %247 = sbr.rel (0) target = $region41
    $region40: #{tpu_custom_call.1} parent=1 // pred_region
      %248 = dma.done [#allocation5], 128
    $region41: #{tpu_custom_call.1} parent=1 // pred_fallthru
      _
    %249 = vsyncpa [#allocation4], 1
    %250 = vsyncpa [#allocation7], 1
    %251 = vsyncpa [#allocation5], 1

</llo_original>
